<compile_context>
chip_gen: v7x
topology: tpu7x:2x2x1
jax: 0.10.0
libtpu: 0.0.40
codegen_flags: <defaults>
</compile_context>

<pallas_src>
from functools import partial

import jax
import jax.numpy as jnp
from jax.experimental import pallas as pl
from jax.experimental.pallas import tpu as pltpu


# ------------------------- helpers -------------------------

def _round_up(n: int, m: int) -> int:
    return ((n + m - 1) // m) * m


# ------------------------- Pallas kernel -------------------------

def _autoencoder_kernel(x_ref,
                        w1_ref, b1_ref, w2_ref, b2_ref,   # encoder
                        w3_ref, b3_ref, w4_ref, b4_ref,   # decoder
                        z_ref, xnew_ref):
    """Fused encoder+decoder MLP for one batch tile.

    encoder: Linear(D,H) -> ReLU -> Linear(H,L)
    decoder: Linear(L,H) -> ReLU -> Linear(H,D) -> Sigmoid
    All feature dims are padded to multiples of 128 (zero-padded weights and
    biases), so every dot and store is lane-dense.  Accumulation in f32.
    """
    x = x_ref[...]

    # --- encoder ---
    h1 = jnp.dot(x, w1_ref[...], preferred_element_type=jnp.float32) + b1_ref[...]
    h1 = jnp.maximum(h1, 0.0)                                           # ReLU
    z = jnp.dot(h1.astype(x.dtype), w2_ref[...],
                preferred_element_type=jnp.float32) + b2_ref[...]
    z_ref[...] = z.astype(z_ref.dtype)                                  # mu == z == z_new

    # --- decoder ---
    h2 = jnp.dot(z.astype(x.dtype), w3_ref[...],
                 preferred_element_type=jnp.float32) + b3_ref[...]
    h2 = jnp.maximum(h2, 0.0)                                           # ReLU
    y = jnp.dot(h2.astype(x.dtype), w4_ref[...],
                preferred_element_type=jnp.float32) + b4_ref[...]
    xnew_ref[...] = jax.nn.sigmoid(y).astype(xnew_ref.dtype)            # Sigmoid


# ------------------------- one-time parameter preparation -------------------------

def prepare_params(params, compute_dtype=jnp.float32):
    """Transpose PyTorch-layout weights to (in, out), zero-pad every feature dim
    to a multiple of 128 (lane-dense), and reshape biases to (1, out_padded).

    Do this ONCE, outside the per-step forward path.
    Set compute_dtype=jnp.bfloat16 on v6e/v7x for the bf16-native MXU.
    """
    H, D_in = params["w1"].shape
    L = params["w2"].shape[0]
    Dp, Hp, Lp = _round_up(D_in, 128), _round_up(H, 128), _round_up(L, 128)

    def prep(w, b, in_p, out_p):
        out_f, in_f = w.shape
        wt = jnp.zeros((in_p, out_p), compute_dtype)
        wt = wt.at[:in_f, :out_f].set(w.T.astype(compute_dtype))
        bt = jnp.zeros((1, out_p), compute_dtype)
        bt = bt.at[0, :out_f].set(b.astype(compute_dtype))
        return wt, bt

    w1, b1 = prep(params["w1"], params["b1"], Dp, Hp)   # encoder Linear(D,H)
    w2, b2 = prep(params["w2"], params["b2"], Hp, Lp)   # encoder Linear(H,L)
    w3, b3 = prep(params["w3"], params["b3"], Lp, Hp)   # decoder Linear(L,H)
    w4, b4 = prep(params["w4"], params["b4"], Hp, Dp)   # decoder Linear(H,D)

    prepared = dict(w1=w1, b1=b1, w2=w2, b2=b2, w3=w3, b3=b3, w4=w4, b4=b4)
    dims = (D_in, H, L)
    return prepared, dims


# ------------------------- forward wrapper (jitted end-to-end) -------------------------

@partial(jax.jit, static_argnames=("dims", "max_batch_tile"))
def autoencoder_forward(x, prepared, dims, *, max_batch_tile=512):
    """Runs the fused autoencoder kernel.

    x        : [B, D_in] float32
    prepared : output of prepare_params (padded, pre-transposed weights)
    dims     : (D_in, H, L) true (unpadded) dims  (static)
    Returns (mu, logvar, z, z_new, x_new) matching the PyTorch forward().
    """
    D_in, H, L = dims
    Dp, Hp = prepared["w1"].shape
    Lp = prepared["w2"].shape[1]
    compute_dtype = prepared["w1"].dtype

    B = x.shape[0]
    # Batch tile: as large as possible (one grid step for small problems);
    # pad B so the grid divides evenly (padded rows are sliced off afterwards).
    batch_tile = min(_round_up(B, 8), max_batch_tile)
    Bp = _round_up(B, batch_tile)
    grid = (Bp // batch_tile,)

    # Glue: pad input rows (batch) and columns (features) with zeros.
    # Fuses with the pallas_call under this jit.
    x_p = jnp.zeros((Bp, Dp), compute_dtype).at[:B, :D_in].set(
        x.astype(compute_dtype))

    def full(shape):
        # whole-array block, replicated across the batch grid (grid-invariant)
        return pl.BlockSpec(shape, lambda i: (0, 0))

    elem_bytes = jnp.dtype(compute_dtype).itemsize
    flops = 2 * Bp * (Dp * Hp + Hp * Lp + Lp * Hp + Hp * Dp)
    transcendentals = Bp * Dp                         # sigmoid exp
    bytes_accessed = (
        elem_bytes * (Bp * Dp                         # x
                      + Dp * Hp + Hp + Hp * Lp + Lp   # encoder params
                      + Lp * Hp + Hp + Hp * Dp + Dp)  # decoder params
        + 4 * (Bp * Lp + Bp * Dp)                     # z, x_new outputs (f32)
    )

    z_p, xnew_p = pl.pallas_call(
        _autoencoder_kernel,
        out_shape=(
            jax.ShapeDtypeStruct((Bp, Lp), jnp.float32),
            jax.ShapeDtypeStruct((Bp, Dp), jnp.float32),
        ),
        grid_spec=pltpu.PrefetchScalarGridSpec(
            num_scalar_prefetch=0,
            grid=grid,
            in_specs=[
                pl.BlockSpec((batch_tile, Dp), lambda i: (i, 0)),  # x tile
                full((Dp, Hp)), full((1, Hp)),                     # enc L1
                full((Hp, Lp)), full((1, Lp)),                     # enc L2
                full((Lp, Hp)), full((1, Hp)),                     # dec L1
                full((Hp, Dp)), full((1, Dp)),                     # dec L2
            ],
            out_specs=[
                pl.BlockSpec((batch_tile, Lp), lambda i: (i, 0)),  # z
                pl.BlockSpec((batch_tile, Dp), lambda i: (i, 0)),  # x_new
            ],
        ),
        compiler_params=pltpu.CompilerParams(
            dimension_semantics=("parallel",)),
        cost_estimate=pl.CostEstimate(
            flops=flops,
            transcendentals=transcendentals,
            bytes_accessed=bytes_accessed),
    )(x_p,
      prepared["w1"], prepared["b1"], prepared["w2"], prepared["b2"],
      prepared["w3"], prepared["b3"], prepared["w4"], prepared["b4"])

    # Slice off batch / feature padding (static slices, fuse under jit).
    z = z_p[:B, :L]
    x_new = xnew_p[:B, :D_in]

    mu = z
    logvar = None     # vanilla autoencoder mode -> logvar is None
    z_new = z         # no temporal_dynamics supplied
    # TODO(synk): beta-vae / denoising branches and the temporal_dynamics
    # callback are config-dependent host-side logic, not implemented here.
    return mu, logvar, z, z_new, x_new


# ------------------------- reference (pure JAX) -------------------------

def _reference_forward(x, p):
    h1 = jnp.maximum(x @ p["w1"].T + p["b1"], 0.0)
    z = h1 @ p["w2"].T + p["b2"]
    h2 = jnp.maximum(z @ p["w3"].T + p["b3"], 0.0)
    y = h2 @ p["w4"].T + p["b4"]
    return z, jax.nn.sigmoid(y)


# ------------------------- main -------------------------

if __name__ == "__main__":
    # Small shapes: batch=16, input features=16, hidden=32, latent=8.
    B, D_in, H, L = 16, 16, 32, 8

    key = jax.random.PRNGKey(0)
    ks = jax.random.split(key, 6)

    def init_linear(k, out_f, in_f):
        # Deterministic PyTorch-style uniform(-1/sqrt(in), 1/sqrt(in)) init.
        kw, kb = jax.random.split(k)
        bound = 1.0 / jnp.sqrt(in_f)
        w = jax.random.uniform(kw, (out_f, in_f), jnp.float32, -bound, bound)
        b = jax.random.uniform(kb, (out_f,), jnp.float32, -bound, bound)
        return w, b

    w1, b1 = init_linear(ks[0], H, D_in)    # encoder Linear(D_in, H)
    w2, b2 = init_linear(ks[1], L, H)       # encoder Linear(H, L)
    w3, b3 = init_linear(ks[2], H, L)       # decoder Linear(L, H)
    w4, b4 = init_linear(ks[3], D_in, H)    # decoder Linear(H, D_in)
    params = dict(w1=w1, b1=b1, w2=w2, b2=b2, w3=w3, b3=b3, w4=w4, b4=b4)

    # One-time weight prep (transpose + lane padding), outside the call path.
    prepared, dims = prepare_params(params)

    x = jax.random.normal(ks[4], (B, D_in), jnp.float32)
    mu, logvar, z, z_new, x_new = autoencoder_forward(x, prepared, dims)
    jax.block_until_ready((mu, z, z_new, x_new))

    # Check against pure-JAX reference.
    z_ref, x_new_ref = _reference_forward(x, params)
    assert jnp.allclose(z, z_ref, atol=1e-5, rtol=1e-5)
    assert jnp.allclose(x_new, x_new_ref, atol=1e-5, rtol=1e-5)
    assert logvar is None
    assert z.shape == (B, L) and z_new.shape == (B, L) and x_new.shape == (B, D_in)

    # Also exercise the non-divisible batch path (B=13 -> padded internally).
    x_odd = jax.random.normal(ks[5], (13, D_in), jnp.float32)
    mu_o, logvar_o, z_o, z_new_o, x_new_o = autoencoder_forward(x_odd, prepared, dims)
    jax.block_until_ready((z_o, x_new_o))
    z_ref_o, x_new_ref_o = _reference_forward(x_odd, params)
    assert jnp.allclose(z_o, z_ref_o, atol=1e-5, rtol=1e-5)
    assert jnp.allclose(x_new_o, x_new_ref_o, atol=1e-5, rtol=1e-5)
    assert z_o.shape == (13, L) and x_new_o.shape == (13, D_in)

    print("KERNEL_OK")
</pallas_src>

<mosaic_0001>
module attributes {stable_mosaic.version = 11 : i64} {
  func.func @_autoencoder_kernel(%arg0: i32, %arg1: memref<16x128xf32, #tpu.memory_space<vmem>>, %arg2: memref<128x128xf32, #tpu.memory_space<vmem>>, %arg3: memref<1x128xf32, #tpu.memory_space<vmem>>, %arg4: memref<128x128xf32, #tpu.memory_space<vmem>>, %arg5: memref<1x128xf32, #tpu.memory_space<vmem>>, %arg6: memref<128x128xf32, #tpu.memory_space<vmem>>, %arg7: memref<1x128xf32, #tpu.memory_space<vmem>>, %arg8: memref<128x128xf32, #tpu.memory_space<vmem>>, %arg9: memref<1x128xf32, #tpu.memory_space<vmem>>, %arg10: memref<16x128xf32, #tpu.memory_space<vmem>>, %arg11: memref<16x128xf32, #tpu.memory_space<vmem>>) attributes {dimension_semantics = [#tpu.dimension_semantics<parallel>], iteration_bounds = array<i64: 1>, scalar_prefetch = 0 : i64, scratch_operands = 0 : i64, tpu.core_type = #tpu.core_type<tc>, window_params = [{transform_indices = @transform_0, window_bounds = array<i64: 16, 128>}, {pipeline_mode = #tpu.pipeline_mode<synchronous>, transform_indices = @transform_1, window_bounds = array<i64: 128, 128>}, {pipeline_mode = #tpu.pipeline_mode<synchronous>, transform_indices = @transform_2, window_bounds = array<i64: 1, 128>}, {pipeline_mode = #tpu.pipeline_mode<synchronous>, transform_indices = @transform_3, window_bounds = array<i64: 128, 128>}, {pipeline_mode = #tpu.pipeline_mode<synchronous>, transform_indices = @transform_4, window_bounds = array<i64: 1, 128>}, {pipeline_mode = #tpu.pipeline_mode<synchronous>, transform_indices = @transform_5, window_bounds = array<i64: 128, 128>}, {pipeline_mode = #tpu.pipeline_mode<synchronous>, transform_indices = @transform_6, window_bounds = array<i64: 1, 128>}, {pipeline_mode = #tpu.pipeline_mode<synchronous>, transform_indices = @transform_7, window_bounds = array<i64: 128, 128>}, {pipeline_mode = #tpu.pipeline_mode<synchronous>, transform_indices = @transform_8, window_bounds = array<i64: 1, 128>}, {transform_indices = @transform_9, window_bounds = array<i64: 16, 128>}, {transform_indices = @transform_10, window_bounds = array<i64: 16, 128>}]} {
    %c0 = arith.constant 0 : index
    %c0_0 = arith.constant 0 : index
    %0 = vector.load %arg1[%c0, %c0_0] : memref<16x128xf32, #tpu.memory_space<vmem>>, vector<16x128xf32>
    %c0_1 = arith.constant 0 : index
    %c0_2 = arith.constant 0 : index
    %1 = vector.load %arg2[%c0_1, %c0_2] : memref<128x128xf32, #tpu.memory_space<vmem>>, vector<128x128xf32>
    %cst = arith.constant dense<0.000000e+00> : vector<16x128xf32>
    %2 = tpu.matmul %0, %1, %cst {dimension_numbers = #tpu.dot_dimension_numbers<[1], [0], [0], [1], [0, 0, 1, 1], [], []>} : vector<16x128xf32>, vector<128x128xf32>, vector<16x128xf32> -> vector<16x128xf32>
    %c0_3 = arith.constant 0 : index
    %c0_4 = arith.constant 0 : index
    %3 = vector.load %arg3[%c0_3, %c0_4] : memref<1x128xf32, #tpu.memory_space<vmem>>, vector<1x128xf32>
    %4 = vector.broadcast %3 : vector<1x128xf32> to vector<16x128xf32>
    %5 = arith.addf %2, %4 : vector<16x128xf32>
    %cst_5 = arith.constant 0.000000e+00 : f32
    %6 = vector.broadcast %cst_5 : f32 to vector<16x128xf32>
    %7 = arith.maximumf %5, %6 : vector<16x128xf32>
    %c0_6 = arith.constant 0 : index
    %c0_7 = arith.constant 0 : index
    %8 = vector.load %arg4[%c0_6, %c0_7] : memref<128x128xf32, #tpu.memory_space<vmem>>, vector<128x128xf32>
    %cst_8 = arith.constant dense<0.000000e+00> : vector<16x128xf32>
    %9 = tpu.matmul %7, %8, %cst_8 {dimension_numbers = #tpu.dot_dimension_numbers<[1], [0], [0], [1], [0, 0, 1, 1], [], []>} : vector<16x128xf32>, vector<128x128xf32>, vector<16x128xf32> -> vector<16x128xf32>
    %c0_9 = arith.constant 0 : index
    %c0_10 = arith.constant 0 : index
    %10 = vector.load %arg5[%c0_9, %c0_10] : memref<1x128xf32, #tpu.memory_space<vmem>>, vector<1x128xf32>
    %11 = vector.broadcast %10 : vector<1x128xf32> to vector<16x128xf32>
    %12 = arith.addf %9, %11 : vector<16x128xf32>
    %c0_11 = arith.constant 0 : index
    %c0_12 = arith.constant 0 : index
    %13 = vector.load %arg10[%c0_11, %c0_12] : memref<16x128xf32, #tpu.memory_space<vmem>>, vector<16x128xf32>
    tpu.vector_store %arg10[%c0_11, %c0_12], %12 {strides = array<i32>} : memref<16x128xf32, #tpu.memory_space<vmem>>, vector<16x128xf32>,
    %c0_13 = arith.constant 0 : index
    %c0_14 = arith.constant 0 : index
    %14 = vector.load %arg6[%c0_13, %c0_14] : memref<128x128xf32, #tpu.memory_space<vmem>>, vector<128x128xf32>
    %cst_15 = arith.constant dense<0.000000e+00> : vector<16x128xf32>
    %15 = tpu.matmul %12, %14, %cst_15 {dimension_numbers = #tpu.dot_dimension_numbers<[1], [0], [0], [1], [0, 0, 1, 1], [], []>} : vector<16x128xf32>, vector<128x128xf32>, vector<16x128xf32> -> vector<16x128xf32>
    %c0_16 = arith.constant 0 : index
    %c0_17 = arith.constant 0 : index
    %16 = vector.load %arg7[%c0_16, %c0_17] : memref<1x128xf32, #tpu.memory_space<vmem>>, vector<1x128xf32>
    %17 = vector.broadcast %16 : vector<1x128xf32> to vector<16x128xf32>
    %18 = arith.addf %15, %17 : vector<16x128xf32>
    %cst_18 = arith.constant 0.000000e+00 : f32
    %19 = vector.broadcast %cst_18 : f32 to vector<16x128xf32>
    %20 = arith.maximumf %18, %19 : vector<16x128xf32>
    %c0_19 = arith.constant 0 : index
    %c0_20 = arith.constant 0 : index
    %21 = vector.load %arg8[%c0_19, %c0_20] : memref<128x128xf32, #tpu.memory_space<vmem>>, vector<128x128xf32>
    %cst_21 = arith.constant dense<0.000000e+00> : vector<16x128xf32>
    %22 = tpu.matmul %20, %21, %cst_21 {dimension_numbers = #tpu.dot_dimension_numbers<[1], [0], [0], [1], [0, 0, 1, 1], [], []>} : vector<16x128xf32>, vector<128x128xf32>, vector<16x128xf32> -> vector<16x128xf32>
    %c0_22 = arith.constant 0 : index
    %c0_23 = arith.constant 0 : index
    %23 = vector.load %arg9[%c0_22, %c0_23] : memref<1x128xf32, #tpu.memory_space<vmem>>, vector<1x128xf32>
    %24 = vector.broadcast %23 : vector<1x128xf32> to vector<16x128xf32>
    %25 = arith.addf %22, %24 : vector<16x128xf32>
    %26 = arith.negf %25 : vector<16x128xf32>
    %27 = math.exp %26 : vector<16x128xf32>
    %cst_24 = arith.constant 1.000000e+00 : f32
    %28 = vector.broadcast %cst_24 : f32 to vector<16x128xf32>
    %29 = arith.addf %28, %27 : vector<16x128xf32>
    %30 = arith.divf %28, %29 : vector<16x128xf32>
    %c0_25 = arith.constant 0 : index
    %c0_26 = arith.constant 0 : index
    %31 = vector.load %arg11[%c0_25, %c0_26] : memref<16x128xf32, #tpu.memory_space<vmem>>, vector<16x128xf32>
    tpu.vector_store %arg11[%c0_25, %c0_26], %30 {strides = array<i32>} : memref<16x128xf32, #tpu.memory_space<vmem>>, vector<16x128xf32>,
    return
  }
  func.func @transform_0(%arg0: i32) -> (i32, i32) {
    %c0_i32 = arith.constant 0 : i32
    %c0_i32_0 = arith.constant 0 : i32
    return %arg0, %c0_i32 : i32, i32
  }
  func.func @transform_1(%arg0: i32) -> (i32, i32) {
    %c0_i32 = arith.constant 0 : i32
    %c0_i32_0 = arith.constant 0 : i32
    %c0_i32_1 = arith.constant 0 : i32
    return %c0_i32, %c0_i32_0 : i32, i32
  }
  func.func @transform_2(%arg0: i32) -> (i32, i32) {
    %c0_i32 = arith.constant 0 : i32
    %c0_i32_0 = arith.constant 0 : i32
    %c0_i32_1 = arith.constant 0 : i32
    return %c0_i32, %c0_i32_0 : i32, i32
  }
  func.func @transform_3(%arg0: i32) -> (i32, i32) {
    %c0_i32 = arith.constant 0 : i32
    %c0_i32_0 = arith.constant 0 : i32
    %c0_i32_1 = arith.constant 0 : i32
    return %c0_i32, %c0_i32_0 : i32, i32
  }
  func.func @transform_4(%arg0: i32) -> (i32, i32) {
    %c0_i32 = arith.constant 0 : i32
    %c0_i32_0 = arith.constant 0 : i32
    %c0_i32_1 = arith.constant 0 : i32
    return %c0_i32, %c0_i32_0 : i32, i32
  }
  func.func @transform_5(%arg0: i32) -> (i32, i32) {
    %c0_i32 = arith.constant 0 : i32
    %c0_i32_0 = arith.constant 0 : i32
    %c0_i32_1 = arith.constant 0 : i32
    return %c0_i32, %c0_i32_0 : i32, i32
  }
  func.func @transform_6(%arg0: i32) -> (i32, i32) {
    %c0_i32 = arith.constant 0 : i32
    %c0_i32_0 = arith.constant 0 : i32
    %c0_i32_1 = arith.constant 0 : i32
    return %c0_i32, %c0_i32_0 : i32, i32
  }
  func.func @transform_7(%arg0: i32) -> (i32, i32) {
    %c0_i32 = arith.constant 0 : i32
    %c0_i32_0 = arith.constant 0 : i32
    %c0_i32_1 = arith.constant 0 : i32
    return %c0_i32, %c0_i32_0 : i32, i32
  }
  func.func @transform_8(%arg0: i32) -> (i32, i32) {
    %c0_i32 = arith.constant 0 : i32
    %c0_i32_0 = arith.constant 0 : i32
    %c0_i32_1 = arith.constant 0 : i32
    return %c0_i32, %c0_i32_0 : i32, i32
  }
  func.func @transform_9(%arg0: i32) -> (i32, i32) {
    %c0_i32 = arith.constant 0 : i32
    %c0_i32_0 = arith.constant 0 : i32
    return %arg0, %c0_i32 : i32, i32
  }
  func.func @transform_10(%arg0: i32) -> (i32, i32) {
    %c0_i32 = arith.constant 0 : i32
    %c0_i32_0 = arith.constant 0 : i32
    return %arg0, %c0_i32 : i32, i32
  }
}

</mosaic_0001>

<llo_original>
// kernel: autoencoder_forward.1
$region0: #{autoencoder_forward.1}
  #allocation0 [shape = 'u32[]', space=smem, size = 0x4, offset = 0x4, fixed_abs, tag = 'smem constant byte address 0x4 - core index']
  #allocation1 [shape = 'u32[144,128]{1,0:T(1,128)}', space=vmem, size = 0x12000, scoped, tag = 'internal scratch']
  %s0 = inlined_call_operand.vmem [shape: f32[16,128], index: 0, kind: input, shape index: {}]
  %s1 = inlined_call_operand.hbm [shape: f32[128,128], index: 1, kind: input, shape index: {}]
  %s2 = inlined_call_operand.vmem [shape: f32[1,128], index: 2, kind: input, shape index: {}]
  %s3 = inlined_call_operand.hbm [shape: f32[128,128], index: 3, kind: input, shape index: {}]
  %s4 = inlined_call_operand.vmem [shape: f32[1,128], index: 4, kind: input, shape index: {}]
  %s5 = inlined_call_operand.hbm [shape: f32[128,128], index: 5, kind: input, shape index: {}]
  %s6 = inlined_call_operand.vmem [shape: f32[1,128], index: 6, kind: input, shape index: {}]
  %s7 = inlined_call_operand.hbm [shape: f32[128,128], index: 7, kind: input, shape index: {}]
  %s8 = inlined_call_operand.vmem [shape: f32[1,128], index: 8, kind: input, shape index: {}]
  %s9 = inlined_call_operand.vmem [shape: f32[16,128], index: 9, kind: output, shape index: {0}]
  %s10 = inlined_call_operand.hbm [shape: f32[16,128], index: 10, kind: output, shape index: {1}]
  %11 = xla_tuple %s9, %s10
  %s12 = sld [smem:[#allocation0]]
  $region70: #{autoencoder_forward.1} parent=0
    _
  %s14 = ssub.s32 1, %s12
  %s15 = scalar_select 0, %s14, %s12
  $region1: #{autoencoder_forward.1} parent=0
    #allocation2 [shape = 'u8[65536]{0}', space=vmem, size = 0x10000, scoped, tag = 'input window, operand 1, single buffered']
    #allocation3 [shape = 's32[1]{0}', space=sflag, size = 0x4, scoped, tag = 'scoped memory for autoencoder_forward.1']
    #allocation4 [shape = 's32[1]{0}', space=sflag, size = 0x4, scoped, tag = 'scoped memory for autoencoder_forward.1']
    #allocation5 [shape = 'u8[65536]{0}', space=vmem, size = 0x10000, scoped, tag = 'input window, operand 3, single buffered']
    #allocation6 [shape = 's32[1]{0}', space=sflag, size = 0x4, scoped, tag = 'scoped memory for autoencoder_forward.1']
    #allocation7 [shape = 'u8[65536]{0}', space=vmem, size = 0x10000, scoped, tag = 'input window, operand 5, single buffered']
    #allocation8 [shape = 'u8[65536]{0}', space=vmem, size = 0x10000, scoped, tag = 'input window, operand 7, single buffered']
    #allocation9 [shape = 's32[1]{0}', space=sflag, size = 0x4, scoped, tag = 'scoped memory for autoencoder_forward.1']
    #allocation10 [shape = 'u8[8192]{0}', space=vmem, size = 0x2000, scoped, tag = 'output window, operand 1, single buffered']
    %16 = vsyncpa [#allocation3], 0
    %17 = vsyncpa [#allocation6], 0
    %18 = vsyncpa [#allocation9], 0
    %19 = vsyncpa [#allocation4], 0
    // Predicated region
    $region2: #{autoencoder_forward.1} parent=1 // pred_check
      _
    $region3: #{autoencoder_forward.1} parent=1 // pred_check_branch
      %21 = sbr.rel (0) target = $region5
    $region4: #{autoencoder_forward.1} parent=1 // pred_region
      _
    $region5: #{autoencoder_forward.1} parent=1 // pred_fallthru
      _
    // Predicated region
    $region6: #{autoencoder_forward.1} parent=1 // pred_check
      _
    $region7: #{autoencoder_forward.1} parent=1 // pred_check_branch
      %23 = sbr.rel (0) target = $region9
    $region8: #{autoencoder_forward.1} parent=1 // pred_region
      %s25 = ssub.s32 2048, 2048
      %26 = vsyncadd [#allocation3], %s25
      %s27 = sshll.u32 [#allocation2], 4
      %s28 = int_to_ptr.vmem [resolvable:$true] %s27
      %33 = dma.hbm_to_vmem [thread:$0]  %s1, 2048, %s28, [#allocation3], 128, 128, 8
    $region9: #{autoencoder_forward.1} parent=1 // pred_fallthru
      _
    // Predicated region
    $region10: #{autoencoder_forward.1} parent=1 // pred_check
      _
    $region11: #{autoencoder_forward.1} parent=1 // pred_check_branch
      %35 = sbr.rel (0) target = $region13
    $region12: #{autoencoder_forward.1} parent=1 // pred_region
      _
    $region13: #{autoencoder_forward.1} parent=1 // pred_fallthru
      _
    // Predicated region
    $region14: #{autoencoder_forward.1} parent=1 // pred_check
      _
    $region15: #{autoencoder_forward.1} parent=1 // pred_check_branch
      %37 = sbr.rel (0) target = $region17
    $region16: #{autoencoder_forward.1} parent=1 // pred_region
      %s39 = ssub.s32 2048, 2048
      %40 = vsyncadd [#allocation6], %s39
      %s41 = sshll.u32 [#allocation5], 4
      %s42 = int_to_ptr.vmem [resolvable:$true] %s41
      %47 = dma.hbm_to_vmem [thread:$0]  %s3, 2048, %s42, [#allocation6], 128, 128, 8
    $region17: #{autoencoder_forward.1} parent=1 // pred_fallthru
      _
    // Predicated region
    $region18: #{autoencoder_forward.1} parent=1 // pred_check
      _
    $region19: #{autoencoder_forward.1} parent=1 // pred_check_branch
      %49 = sbr.rel (0) target = $region21
    $region20: #{autoencoder_forward.1} parent=1 // pred_region
      _
    $region21: #{autoencoder_forward.1} parent=1 // pred_fallthru
      _
    // Predicated region
    $region22: #{autoencoder_forward.1} parent=1 // pred_check
      _
    $region23: #{autoencoder_forward.1} parent=1 // pred_check_branch
      %51 = sbr.rel (0) target = $region25
    $region24: #{autoencoder_forward.1} parent=1 // pred_region
      %s53 = ssub.s32 2048, 2048
      %54 = vsyncadd [#allocation6], %s53
      %s55 = sshll.u32 [#allocation7], 4
      %s56 = int_to_ptr.vmem [resolvable:$true] %s55
      %61 = dma.hbm_to_vmem [thread:$0]  %s5, 2048, %s56, [#allocation6], 128, 128, 8
    $region25: #{autoencoder_forward.1} parent=1 // pred_fallthru
      _
    // Predicated region
    $region26: #{autoencoder_forward.1} parent=1 // pred_check
      _
    $region27: #{autoencoder_forward.1} parent=1 // pred_check_branch
      %63 = sbr.rel (0) target = $region29
    $region28: #{autoencoder_forward.1} parent=1 // pred_region
      _
    $region29: #{autoencoder_forward.1} parent=1 // pred_fallthru
      _
    // Predicated region
    $region30: #{autoencoder_forward.1} parent=1 // pred_check
      _
    $region31: #{autoencoder_forward.1} parent=1 // pred_check_branch
      %65 = sbr.rel (0) target = $region33
    $region32: #{autoencoder_forward.1} parent=1 // pred_region
      %s67 = ssub.s32 2048, 2048
      %68 = vsyncadd [#allocation9], %s67
      %s69 = sshll.u32 [#allocation8], 4
      %s70 = int_to_ptr.vmem [resolvable:$true] %s69
      %75 = dma.hbm_to_vmem [thread:$0]  %s7, 2048, %s70, [#allocation9], 128, 128, 8
    $region33: #{autoencoder_forward.1} parent=1 // pred_fallthru
      _
    // Predicated region
    $region34: #{autoencoder_forward.1} parent=1 // pred_check
      _
    $region35: #{autoencoder_forward.1} parent=1 // pred_check_branch
      %77 = sbr.rel (0) target = $region37
    $region36: #{autoencoder_forward.1} parent=1 // pred_region
      _
    $region37: #{autoencoder_forward.1} parent=1 // pred_fallthru
      _
    // Predicated region
    $region38: #{autoencoder_forward.1} parent=1 // pred_check
      _
    $region39: #{autoencoder_forward.1} parent=1 // pred_check_branch
      %79 = sbr.rel (0) target = $region41
    $region40: #{autoencoder_forward.1} parent=1 // pred_region
      %80 = dma.done [#allocation3], 2048
    $region41: #{autoencoder_forward.1} parent=1 // pred_fallthru
      _
    // Predicated region
    $region42: #{autoencoder_forward.1} parent=1 // pred_check
      _
    $region43: #{autoencoder_forward.1} parent=1 // pred_check_branch
      %82 = sbr.rel (0) target = $region45
    $region44: #{autoencoder_forward.1} parent=1 // pred_region
      %83 = dma.done [#allocation6], 2048
    $region45: #{autoencoder_forward.1} parent=1 // pred_fallthru
      _
    // Predicated region
    $region46: #{autoencoder_forward.1} parent=1 // pred_check
      _
    $region47: #{autoencoder_forward.1} parent=1 // pred_check_branch
      %85 = sbr.rel (0) target = $region49
    $region48: #{autoencoder_forward.1} parent=1 // pred_region
      %86 = dma.done [#allocation6], 2048
    $region49: #{autoencoder_forward.1} parent=1 // pred_fallthru
      _
    // Predicated region
    $region50: #{autoencoder_forward.1} parent=1 // pred_check
      _
    $region51: #{autoencoder_forward.1} parent=1 // pred_check_branch
      %88 = sbr.rel (0) target = $region53
    $region52: #{autoencoder_forward.1} parent=1 // pred_region
      %89 = dma.done [#allocation9], 2048
    $region53: #{autoencoder_forward.1} parent=1 // pred_fallthru
      _
    %v90 = vld [vmem:[%s0] sm:$0xff]
    %v91 = vld [vmem:[%s0 + $0x8] sm:$0xff]
    %v92 = vld [vmem:[#allocation2] sm:$0xff]
    %v93 = vld [vmem:[#allocation2 + $0x8] sm:$0xff]
    %v94 = vld [vmem:[#allocation2 + $0x10] sm:$0xff]
    %v95 = vld [vmem:[#allocation2 + $0x18] sm:$0xff]
    %v96 = vld [vmem:[#allocation2 + $0x20] sm:$0xff]
    %v97 = vld [vmem:[#allocation2 + $0x28] sm:$0xff]
    %v98 = vld [vmem:[#allocation2 + $0x30] sm:$0xff]
    %v99 = vld [vmem:[#allocation2 + $0x38] sm:$0xff]
    %v100 = vld [vmem:[#allocation2 + $0x40] sm:$0xff]
    %v101 = vld [vmem:[#allocation2 + $0x48] sm:$0xff]
    %v102 = vld [vmem:[#allocation2 + $0x50] sm:$0xff]
    %v103 = vld [vmem:[#allocation2 + $0x58] sm:$0xff]
    %v104 = vld [vmem:[#allocation2 + $0x60] sm:$0xff]
    %v105 = vld [vmem:[#allocation2 + $0x68] sm:$0xff]
    %v106 = vld [vmem:[#allocation2 + $0x70] sm:$0xff]
    %v107 = vld [vmem:[#allocation2 + $0x78] sm:$0xff]
    %v108 = vld [vmem:[%s2] sm:$0x1]
    %v110 = vlaneseq
    %v111 = vshrl.u32 %v110, 7
    %v112 = vsub.s32 0, %v111
    %v113 = vrot.slane %v108, %v112
    %115 = vmatprep.subr.mxu0 0.0
    %116 = vmatpush1.msra.mxu0 %v92
    %117 = vmatprep.subr.mxu0 0.0
    %118 = vmatpush1.msra.mxu0 %v93
    %119 = vmatprep.subr.mxu0 0.0
    %120 = vmatpush1.msra.mxu0 %v94
    %121 = vmatprep.subr.mxu0 0.0
    %122 = vmatpush1.msra.mxu0 %v95
    %123 = vmatprep.subr.mxu0 0.0
    %124 = vmatpush1.msra.mxu0 %v96
    %125 = vmatprep.subr.mxu0 0.0
    %126 = vmatpush1.msra.mxu0 %v97
    %127 = vmatprep.subr.mxu0 0.0
    %128 = vmatpush1.msra.mxu0 %v98
    %129 = vmatprep.subr.mxu0 0.0
    %130 = vmatpush1.msra.mxu0 %v99
    %131 = vmatprep.subr.mxu0 0.0
    %132 = vmatpush1.msra.mxu0 %v100
    %133 = vmatprep.subr.mxu0 0.0
    %134 = vmatpush1.msra.mxu0 %v101
    %135 = vmatprep.subr.mxu0 0.0
    %136 = vmatpush1.msra.mxu0 %v102
    %137 = vmatprep.subr.mxu0 0.0
    %138 = vmatpush1.msra.mxu0 %v103
    %139 = vmatprep.subr.mxu0 0.0
    %140 = vmatpush1.msra.mxu0 %v104
    %141 = vmatprep.subr.mxu0 0.0
    %142 = vmatpush1.msra.mxu0 %v105
    %143 = vmatprep.subr.mxu0 0.0
    %144 = vmatpush1.msra.mxu0 %v106
    %145 = vmatprep.subr.mxu0 0.0
    %146 = vmatpush1.msra.mxu0 %v107
    %147 = vmatprep.subr.mxu0 0.0
    %148 = vmatpush1.msra.mxu0 0.0
    %149 = vmatprep.subr.mxu0 0.0
    %150 = vmatpush1.msra.mxu0 0.0
    %151 = vmatprep.subr.mxu0 0.0
    %152 = vmatpush1.msra.mxu0 0.0
    %153 = vmatprep.subr.mxu0 0.0
    %154 = vmatpush1.msra.mxu0 0.0
    %155 = vmatprep.subr.mxu0 0.0
    %156 = vmatpush1.msra.mxu0 0.0
    %157 = vmatprep.subr.mxu0 0.0
    %158 = vmatpush1.msra.mxu0 0.0
    %159 = vmatprep.subr.mxu0 0.0
    %160 = vmatpush1.msra.mxu0 0.0
    %161 = vmatprep.subr.mxu0 0.0
    %162 = vmatpush1.msra.mxu0 0.0
    %163 = vmatprep.subr.mxu0 0.0
    %164 = vmatpush1.msra.mxu0 0.0
    %165 = vmatprep.subr.mxu0 0.0
    %166 = vmatpush1.msra.mxu0 0.0
    %167 = vmatprep.subr.mxu0 0.0
    %168 = vmatpush1.msra.mxu0 0.0
    %169 = vmatprep.subr.mxu0 0.0
    %170 = vmatpush1.msra.mxu0 0.0
    %171 = vmatprep.subr.mxu0 0.0
    %172 = vmatpush1.msra.mxu0 0.0
    %173 = vmatprep.subr.mxu0 0.0
    %174 = vmatpush1.msra.mxu0 0.0
    %175 = vmatprep.subr.mxu0 0.0
    %176 = vmatpush1.msra.mxu0 0.0
    %177 = vmatprep.subr.mxu0 0.0
    %178 = vmatpush1.msra.mxu0 0.0
    %179 = vmatprep.mubr.f32.mxu0 0.0
    %180 = vmatmul.mubr.f32.gmra.mrb[0].mxu0 %v90
    %v181 = vpop.f32.mrb[0].mxu0
    %v182 = vadd.f32 %v113, %v181
    %v183 = vpop.f32.mrb[0].mxu0
    %184 = vmatprep.mubr.f32.mxu0 0.0
    %185 = vmatmul.mubr.f32.gmra.mrb[0].mxu0 %v91
    %v186 = vpop.f32.mrb[0].mxu0
    %v187 = vadd.f32 %v113, %v186
    %v188 = vpop.f32.mrb[0].mxu0
    %189 = vdwg.mxu0
    %v190 = vmax.f32 %v182, 0.0
    %v191 = vmax.f32 %v187, 0.0
    %v192 = vld [vmem:[#allocation5] sm:$0xff]
    %v193 = vld [vmem:[#allocation5 + $0x8] sm:$0xff]
    %v194 = vld [vmem:[#allocation5 + $0x10] sm:$0xff]
    %v195 = vld [vmem:[#allocation5 + $0x18] sm:$0xff]
    %v196 = vld [vmem:[#allocation5 + $0x20] sm:$0xff]
    %v197 = vld [vmem:[#allocation5 + $0x28] sm:$0xff]
    %v198 = vld [vmem:[#allocation5 + $0x30] sm:$0xff]
    %v199 = vld [vmem:[#allocation5 + $0x38] sm:$0xff]
    %v200 = vld [vmem:[#allocation5 + $0x40] sm:$0xff]
    %v201 = vld [vmem:[#allocation5 + $0x48] sm:$0xff]
    %v202 = vld [vmem:[#allocation5 + $0x50] sm:$0xff]
    %v203 = vld [vmem:[#allocation5 + $0x58] sm:$0xff]
    %v204 = vld [vmem:[#allocation5 + $0x60] sm:$0xff]
    %v205 = vld [vmem:[#allocation5 + $0x68] sm:$0xff]
    %v206 = vld [vmem:[#allocation5 + $0x70] sm:$0xff]
    %v207 = vld [vmem:[#allocation5 + $0x78] sm:$0xff]
    %v208 = vld [vmem:[%s4] sm:$0x1]
    %v210 = vlaneseq
    %v211 = vshrl.u32 %v210, 7
    %v212 = vsub.s32 0, %v211
    %v213 = vrot.slane %v208, %v212
    %215 = vmatprep.subr.mxu0 0.0
    %216 = vmatpush1.msra.mxu0 %v192
    %217 = vmatprep.subr.mxu0 0.0
    %218 = vmatpush1.msra.mxu0 %v193
    %219 = vmatprep.subr.mxu0 0.0
    %220 = vmatpush1.msra.mxu0 %v194
    %221 = vmatprep.subr.mxu0 0.0
    %222 = vmatpush1.msra.mxu0 %v195
    %223 = vmatprep.subr.mxu0 0.0
    %224 = vmatpush1.msra.mxu0 %v196
    %225 = vmatprep.subr.mxu0 0.0
    %226 = vmatpush1.msra.mxu0 %v197
    %227 = vmatprep.subr.mxu0 0.0
    %228 = vmatpush1.msra.mxu0 %v198
    %229 = vmatprep.subr.mxu0 0.0
    %230 = vmatpush1.msra.mxu0 %v199
    %231 = vmatprep.subr.mxu0 0.0
    %232 = vmatpush1.msra.mxu0 %v200
    %233 = vmatprep.subr.mxu0 0.0
    %234 = vmatpush1.msra.mxu0 %v201
    %235 = vmatprep.subr.mxu0 0.0
    %236 = vmatpush1.msra.mxu0 %v202
    %237 = vmatprep.subr.mxu0 0.0
    %238 = vmatpush1.msra.mxu0 %v203
    %239 = vmatprep.subr.mxu0 0.0
    %240 = vmatpush1.msra.mxu0 %v204
    %241 = vmatprep.subr.mxu0 0.0
    %242 = vmatpush1.msra.mxu0 %v205
    %243 = vmatprep.subr.mxu0 0.0
    %244 = vmatpush1.msra.mxu0 %v206
    %245 = vmatprep.subr.mxu0 0.0
    %246 = vmatpush1.msra.mxu0 %v207
    %247 = vmatprep.subr.mxu0 0.0
    %248 = vmatpush1.msra.mxu0 0.0
    %249 = vmatprep.subr.mxu0 0.0
    %250 = vmatpush1.msra.mxu0 0.0
    %251 = vmatprep.subr.mxu0 0.0
    %252 = vmatpush1.msra.mxu0 0.0
    %253 = vmatprep.subr.mxu0 0.0
    %254 = vmatpush1.msra.mxu0 0.0
    %255 = vmatprep.subr.mxu0 0.0
    %256 = vmatpush1.msra.mxu0 0.0
    %257 = vmatprep.subr.mxu0 0.0
    %258 = vmatpush1.msra.mxu0 0.0
    %259 = vmatprep.subr.mxu0 0.0
    %260 = vmatpush1.msra.mxu0 0.0
    %261 = vmatprep.subr.mxu0 0.0
    %262 = vmatpush1.msra.mxu0 0.0
    %263 = vmatprep.subr.mxu0 0.0
    %264 = vmatpush1.msra.mxu0 0.0
    %265 = vmatprep.subr.mxu0 0.0
    %266 = vmatpush1.msra.mxu0 0.0
    %267 = vmatprep.subr.mxu0 0.0
    %268 = vmatpush1.msra.mxu0 0.0
    %269 = vmatprep.subr.mxu0 0.0
    %270 = vmatpush1.msra.mxu0 0.0
    %271 = vmatprep.subr.mxu0 0.0
    %272 = vmatpush1.msra.mxu0 0.0
    %273 = vmatprep.subr.mxu0 0.0
    %274 = vmatpush1.msra.mxu0 0.0
    %275 = vmatprep.subr.mxu0 0.0
    %276 = vmatpush1.msra.mxu0 0.0
    %277 = vmatprep.subr.mxu0 0.0
    %278 = vmatpush1.msra.mxu0 0.0
    %279 = vmatprep.mubr.f32.mxu0 0.0
    %280 = vmatmul.mubr.f32.gmra.mrb[0].mxu0 %v190
    %v281 = vpop.f32.mrb[0].mxu0
    %v282 = vadd.f32 %v213, %v281
    %v283 = vpop.f32.mrb[0].mxu0
    %284 = vmatprep.mubr.f32.mxu0 0.0
    %285 = vmatmul.mubr.f32.gmra.mrb[0].mxu0 %v191
    %v286 = vpop.f32.mrb[0].mxu0
    %v287 = vadd.f32 %v213, %v286
    %v288 = vpop.f32.mrb[0].mxu0
    %289 = vdwg.mxu0
    %290 = vst [vmem:[%s9] sm:$0xff] %v282
    %291 = vst [vmem:[%s9 + $0x8] sm:$0xff] %v287
    %v292 = vld [vmem:[#allocation7] sm:$0xff]
    %v293 = vld [vmem:[#allocation7 + $0x8] sm:$0xff]
    %v294 = vld [vmem:[#allocation7 + $0x10] sm:$0xff]
    %v295 = vld [vmem:[#allocation7 + $0x18] sm:$0xff]
    %v296 = vld [vmem:[#allocation7 + $0x20] sm:$0xff]
    %v297 = vld [vmem:[#allocation7 + $0x28] sm:$0xff]
    %v298 = vld [vmem:[#allocation7 + $0x30] sm:$0xff]
    %v299 = vld [vmem:[#allocation7 + $0x38] sm:$0xff]
    %v300 = vld [vmem:[#allocation7 + $0x40] sm:$0xff]
    %v301 = vld [vmem:[#allocation7 + $0x48] sm:$0xff]
    %v302 = vld [vmem:[#allocation7 + $0x50] sm:$0xff]
    %v303 = vld [vmem:[#allocation7 + $0x58] sm:$0xff]
    %v304 = vld [vmem:[#allocation7 + $0x60] sm:$0xff]
    %v305 = vld [vmem:[#allocation7 + $0x68] sm:$0xff]
    %v306 = vld [vmem:[#allocation7 + $0x70] sm:$0xff]
    %v307 = vld [vmem:[#allocation7 + $0x78] sm:$0xff]
    %v308 = vld [vmem:[%s6] sm:$0x1]
    %v310 = vlaneseq
    %v311 = vshrl.u32 %v310, 7
    %v312 = vsub.s32 0, %v311
    %v313 = vrot.slane %v308, %v312
    %315 = vmatprep.subr.mxu0 0.0
    %316 = vmatpush1.msra.mxu0 %v292
    %317 = vmatprep.subr.mxu0 0.0
    %318 = vmatpush1.msra.mxu0 %v293
    %319 = vmatprep.subr.mxu0 0.0
    %320 = vmatpush1.msra.mxu0 %v294
    %321 = vmatprep.subr.mxu0 0.0
    %322 = vmatpush1.msra.mxu0 %v295
    %323 = vmatprep.subr.mxu0 0.0
    %324 = vmatpush1.msra.mxu0 %v296
    %325 = vmatprep.subr.mxu0 0.0
    %326 = vmatpush1.msra.mxu0 %v297
    %327 = vmatprep.subr.mxu0 0.0
    %328 = vmatpush1.msra.mxu0 %v298
    %329 = vmatprep.subr.mxu0 0.0
    %330 = vmatpush1.msra.mxu0 %v299
    %331 = vmatprep.subr.mxu0 0.0
    %332 = vmatpush1.msra.mxu0 %v300
    %333 = vmatprep.subr.mxu0 0.0
    %334 = vmatpush1.msra.mxu0 %v301
    %335 = vmatprep.subr.mxu0 0.0
    %336 = vmatpush1.msra.mxu0 %v302
    %337 = vmatprep.subr.mxu0 0.0
    %338 = vmatpush1.msra.mxu0 %v303
    %339 = vmatprep.subr.mxu0 0.0
    %340 = vmatpush1.msra.mxu0 %v304
    %341 = vmatprep.subr.mxu0 0.0
    %342 = vmatpush1.msra.mxu0 %v305
    %343 = vmatprep.subr.mxu0 0.0
    %344 = vmatpush1.msra.mxu0 %v306
    %345 = vmatprep.subr.mxu0 0.0
    %346 = vmatpush1.msra.mxu0 %v307
    %347 = vmatprep.subr.mxu0 0.0
    %348 = vmatpush1.msra.mxu0 0.0
    %349 = vmatprep.subr.mxu0 0.0
    %350 = vmatpush1.msra.mxu0 0.0
    %351 = vmatprep.subr.mxu0 0.0
    %352 = vmatpush1.msra.mxu0 0.0
    %353 = vmatprep.subr.mxu0 0.0
    %354 = vmatpush1.msra.mxu0 0.0
    %355 = vmatprep.subr.mxu0 0.0
    %356 = vmatpush1.msra.mxu0 0.0
    %357 = vmatprep.subr.mxu0 0.0
    %358 = vmatpush1.msra.mxu0 0.0
    %359 = vmatprep.subr.mxu0 0.0
    %360 = vmatpush1.msra.mxu0 0.0
    %361 = vmatprep.subr.mxu0 0.0
    %362 = vmatpush1.msra.mxu0 0.0
    %363 = vmatprep.subr.mxu0 0.0
    %364 = vmatpush1.msra.mxu0 0.0
    %365 = vmatprep.subr.mxu0 0.0
    %366 = vmatpush1.msra.mxu0 0.0
    %367 = vmatprep.subr.mxu0 0.0
    %368 = vmatpush1.msra.mxu0 0.0
    %369 = vmatprep.subr.mxu0 0.0
    %370 = vmatpush1.msra.mxu0 0.0
    %371 = vmatprep.subr.mxu0 0.0
    %372 = vmatpush1.msra.mxu0 0.0
    %373 = vmatprep.subr.mxu0 0.0
    %374 = vmatpush1.msra.mxu0 0.0
    %375 = vmatprep.subr.mxu0 0.0
    %376 = vmatpush1.msra.mxu0 0.0
    %377 = vmatprep.subr.mxu0 0.0
    %378 = vmatpush1.msra.mxu0 0.0
    %379 = vmatprep.mubr.f32.mxu0 0.0
    %380 = vmatmul.mubr.f32.gmra.mrb[0].mxu0 %v282
    %v381 = vpop.f32.mrb[0].mxu0
    %v382 = vadd.f32 %v313, %v381
    %v383 = vpop.f32.mrb[0].mxu0
    %384 = vmatprep.mubr.f32.mxu0 0.0
    %385 = vmatmul.mubr.f32.gmra.mrb[0].mxu0 %v287
    %v386 = vpop.f32.mrb[0].mxu0
    %v387 = vadd.f32 %v313, %v386
    %v388 = vpop.f32.mrb[0].mxu0
    %389 = vdwg.mxu0
    %v390 = vmax.f32 %v382, 0.0
    %v391 = vmax.f32 %v387, 0.0
    %v392 = vld [vmem:[#allocation8] sm:$0xff]
    %v393 = vld [vmem:[#allocation8 + $0x8] sm:$0xff]
    %v394 = vld [vmem:[#allocation8 + $0x10] sm:$0xff]
    %v395 = vld [vmem:[#allocation8 + $0x18] sm:$0xff]
    %v396 = vld [vmem:[#allocation8 + $0x20] sm:$0xff]
    %v397 = vld [vmem:[#allocation8 + $0x28] sm:$0xff]
    %v398 = vld [vmem:[#allocation8 + $0x30] sm:$0xff]
    %v399 = vld [vmem:[#allocation8 + $0x38] sm:$0xff]
    %v400 = vld [vmem:[#allocation8 + $0x40] sm:$0xff]
    %v401 = vld [vmem:[#allocation8 + $0x48] sm:$0xff]
    %v402 = vld [vmem:[#allocation8 + $0x50] sm:$0xff]
    %v403 = vld [vmem:[#allocation8 + $0x58] sm:$0xff]
    %v404 = vld [vmem:[#allocation8 + $0x60] sm:$0xff]
    %v405 = vld [vmem:[#allocation8 + $0x68] sm:$0xff]
    %v406 = vld [vmem:[#allocation8 + $0x70] sm:$0xff]
    %v407 = vld [vmem:[#allocation8 + $0x78] sm:$0xff]
    %v408 = vld [vmem:[%s8] sm:$0x1]
    %v410 = vlaneseq
    %v411 = vshrl.u32 %v410, 7
    %v412 = vsub.s32 0, %v411
    %v413 = vrot.slane %v408, %v412
    %415 = vmatprep.subr.mxu0 0.0
    %416 = vmatpush1.msra.mxu0 %v392
    %417 = vmatprep.subr.mxu0 0.0
    %418 = vmatpush1.msra.mxu0 %v393
    %419 = vmatprep.subr.mxu0 0.0
    %420 = vmatpush1.msra.mxu0 %v394
    %421 = vmatprep.subr.mxu0 0.0
    %422 = vmatpush1.msra.mxu0 %v395
    %423 = vmatprep.subr.mxu0 0.0
    %424 = vmatpush1.msra.mxu0 %v396
    %425 = vmatprep.subr.mxu0 0.0
    %426 = vmatpush1.msra.mxu0 %v397
    %427 = vmatprep.subr.mxu0 0.0
    %428 = vmatpush1.msra.mxu0 %v398
    %429 = vmatprep.subr.mxu0 0.0
    %430 = vmatpush1.msra.mxu0 %v399
    %431 = vmatprep.subr.mxu0 0.0
    %432 = vmatpush1.msra.mxu0 %v400
    %433 = vmatprep.subr.mxu0 0.0
    %434 = vmatpush1.msra.mxu0 %v401
    %435 = vmatprep.subr.mxu0 0.0
    %436 = vmatpush1.msra.mxu0 %v402
    %437 = vmatprep.subr.mxu0 0.0
    %438 = vmatpush1.msra.mxu0 %v403
    %439 = vmatprep.subr.mxu0 0.0
    %440 = vmatpush1.msra.mxu0 %v404
    %441 = vmatprep.subr.mxu0 0.0
    %442 = vmatpush1.msra.mxu0 %v405
    %443 = vmatprep.subr.mxu0 0.0
    %444 = vmatpush1.msra.mxu0 %v406
    %445 = vmatprep.subr.mxu0 0.0
    %446 = vmatpush1.msra.mxu0 %v407
    %447 = vmatprep.subr.mxu0 0.0
    %448 = vmatpush1.msra.mxu0 0.0
    %449 = vmatprep.subr.mxu0 0.0
    %450 = vmatpush1.msra.mxu0 0.0
    %451 = vmatprep.subr.mxu0 0.0
    %452 = vmatpush1.msra.mxu0 0.0
    %453 = vmatprep.subr.mxu0 0.0
    %454 = vmatpush1.msra.mxu0 0.0
    %455 = vmatprep.subr.mxu0 0.0
    %456 = vmatpush1.msra.mxu0 0.0
    %457 = vmatprep.subr.mxu0 0.0
    %458 = vmatpush1.msra.mxu0 0.0
    %459 = vmatprep.subr.mxu0 0.0
    %460 = vmatpush1.msra.mxu0 0.0
    %461 = vmatprep.subr.mxu0 0.0
    %462 = vmatpush1.msra.mxu0 0.0
    %463 = vmatprep.subr.mxu0 0.0
    %464 = vmatpush1.msra.mxu0 0.0
    %465 = vmatprep.subr.mxu0 0.0
    %466 = vmatpush1.msra.mxu0 0.0
    %467 = vmatprep.subr.mxu0 0.0
    %468 = vmatpush1.msra.mxu0 0.0
    %469 = vmatprep.subr.mxu0 0.0
    %470 = vmatpush1.msra.mxu0 0.0
    %471 = vmatprep.subr.mxu0 0.0
    %472 = vmatpush1.msra.mxu0 0.0
    %473 = vmatprep.subr.mxu0 0.0
    %474 = vmatpush1.msra.mxu0 0.0
    %475 = vmatprep.subr.mxu0 0.0
    %476 = vmatpush1.msra.mxu0 0.0
    %477 = vmatprep.subr.mxu0 0.0
    %478 = vmatpush1.msra.mxu0 0.0
    %479 = vmatprep.mubr.f32.mxu0 0.0
    %480 = vmatmul.mubr.f32.gmra.mrb[0].mxu0 %v390
    %v481 = vpop.f32.mrb[0].mxu0
    %v482 = vadd.f32 %v413, %v481
    %v483 = vpop.f32.mrb[0].mxu0
    %484 = vmatprep.mubr.f32.mxu0 0.0
    %485 = vmatmul.mubr.f32.gmra.mrb[0].mxu0 %v391
    %v486 = vpop.f32.mrb[0].mxu0
    %v487 = vadd.f32 %v413, %v486
    %v488 = vpop.f32.mrb[0].mxu0
    %489 = vdwg.mxu0
    %v490 = vxor.u32 %v482, 2147483648
    %v491 = vxor.u32 %v487, 2147483648
    %v492 = vmul.f32 %v490, 1.442695
    %v493 = vpow.pop %v492
    %v494 = vmul.f32 %v491, 1.442695
    %v495 = vpow.pop %v494
    %v496 = vadd.f32 %v493, 1.0
    %v497 = vadd.f32 %v495, 1.0
    %v498 = vrcp.pop %v496
    %v499 = vmul.f32 1.0, %v498
    %v500 = vrcp.pop %v497
    %v501 = vmul.f32 1.0, %v500
    %502 = vst [vmem:[#allocation10] sm:$0xff] %v499
    %503 = vst [vmem:[#allocation10 + $0x8] sm:$0xff] %v501
    // Predicated region
    $region54: #{autoencoder_forward.1} parent=1 // pred_check
      _
    $region55: #{autoencoder_forward.1} parent=1 // pred_check_branch
      %505 = sbr.rel (0) target = $region57
    $region56: #{autoencoder_forward.1} parent=1 // pred_region
      _
    $region57: #{autoencoder_forward.1} parent=1 // pred_fallthru
      _
    // Predicated region
    $region58: #{autoencoder_forward.1} parent=1 // pred_check
      _
    $region59: #{autoencoder_forward.1} parent=1 // pred_check_branch
      %507 = sbr.rel (0) target = $region61
    $region60: #{autoencoder_forward.1} parent=1 // pred_region
      %s509 = ssub.s32 256, 256
      %510 = vsyncadd [#allocation4], %s509
      %s511 = sshll.u32 [#allocation10], 4
      %s512 = int_to_ptr.vmem [resolvable:$true] %s511
      %517 = dma.vmem_to_hbm [thread:$0]  %s512, 256, %s10, [#allocation4], 128, 128, 8
    $region61: #{autoencoder_forward.1} parent=1 // pred_fallthru
      _
    // Predicated region
    $region62: #{autoencoder_forward.1} parent=1 // pred_check
      _
    $region63: #{autoencoder_forward.1} parent=1 // pred_check_branch
      %519 = sbr.rel (0) target = $region65
    $region64: #{autoencoder_forward.1} parent=1 // pred_region
      _
    $region65: #{autoencoder_forward.1} parent=1 // pred_fallthru
      _
    // Predicated region
    $region66: #{autoencoder_forward.1} parent=1 // pred_check
      _
    $region67: #{autoencoder_forward.1} parent=1 // pred_check_branch
      %521 = sbr.rel (0) target = $region69
    $region68: #{autoencoder_forward.1} parent=1 // pred_region
      %522 = dma.done [#allocation4], 256
    $region69: #{autoencoder_forward.1} parent=1 // pred_fallthru
      _
    %523 = vsyncpa [#allocation3], 1
    %524 = vsyncpa [#allocation6], 1
    %525 = vsyncpa [#allocation9], 1
    %526 = vsyncpa [#allocation4], 1

</llo_original>
